<compile_context>
chip_gen: v7x
topology: tpu7x:2x2x1
jax: 0.10.0
libtpu: 0.0.40
codegen_flags: <defaults>
</compile_context>

<pallas_src>
import jax
import jax.numpy as jnp
from jax.experimental import pallas as pl
from jax.experimental.pallas import tpu as pltpu


def _round_up(x, m):
    return ((x + m - 1) // m) * m


def _rbf_tile_kernel(xi_ref, xjt_ref, ri_ref, rj_ref, o_ref):
    """One (TM, TN) tile of the covariance matrix.

    xi_ref:  VMEM (TM, D)   -- rows already scaled by sqrt(ls)
    xjt_ref: VMEM (D, TN)   -- columns already scaled by sqrt(ls)
    ri_ref:  VMEM (TM, 1)   -- -0.5*ls*||xi||^2 + log(var_s)
    rj_ref:  VMEM (1, TN)   -- -0.5*ls*||xj||^2
    o_ref:   VMEM (TM, TN)
    """
    # MXU: cross inner products of the pre-scaled inputs (NN matmul, no .T).
    g = jnp.dot(xi_ref[...], xjt_ref[...], preferred_element_type=jnp.float32)
    # VPU broadcast adds + EUP exp; all scalar factors already folded in.
    o_ref[...] = jnp.exp(g + ri_ref[...] + rj_ref[...])


def rbf_kernel_pallas(xi, xj, length_scale, sigma_s, eps=1e-6,
                      *, tm=256, tn=1024):
    """RBFKernel.forward(xi, xj) via Pallas.

    xi: (Ni, D), xj: (Nj, D).
    length_scale, sigma_s: shape-(1,) parameters.
    Returns (Ni, Nj) float32 covariance matrix.
    """
    Ni, D = xi.shape
    Nj, Dj = xj.shape
    assert D == Dj, "feature dims must match"

    xi = xi.astype(jnp.float32)
    xj = xj.astype(jnp.float32)

    # Parameter glue (plain JAX): clamp exactly as PyTorch does.
    ls = jnp.clip(jnp.reshape(length_scale, ()).astype(jnp.float32) ** (-2),
                  eps, 1e5)
    var_s = jnp.clip(jnp.reshape(sigma_s, ()).astype(jnp.float32) ** 2,
                     eps, 1e5)
    sqrt_ls = jnp.sqrt(ls)
    log_var_s = jnp.log(var_s)

    # Hoisted out of the hot path: scale rows once, precompute row norms once,
    # fold -0.5 and log(var_s) into the norm vectors.
    xi_s = xi * sqrt_ls                                            # (Ni, D)
    xjt_s = (xj * sqrt_ls).T                                       # (D, Nj)
    ri = -0.5 * jnp.sum(xi_s * xi_s, axis=-1, keepdims=True) + log_var_s  # (Ni, 1)
    rj = -0.5 * jnp.sum(xjt_s * xjt_s, axis=0, keepdims=True)            # (1, Nj)

    # Tile sizes: large, lane-dense, clamped to the (padded) problem size.
    tm = max(8, min(tm, _round_up(Ni, 8)))        # multiple of 8 sublanes
    tn = max(128, min(tn, _round_up(Nj, 128)))    # multiple of 128 lanes

    Mp = _round_up(Ni, tm)
    Np = _round_up(Nj, tn)

    if Mp != Ni:
        xi_s = jnp.pad(xi_s, ((0, Mp - Ni), (0, 0)))
        ri = jnp.pad(ri, ((0, Mp - Ni), (0, 0)))
    if Np != Nj:
        xjt_s = jnp.pad(xjt_s, ((0, 0), (0, Np - Nj)))
        rj = jnp.pad(rj, ((0, 0), (0, Np - Nj)))

    grid = (Mp // tm, Np // tn)

    out = pl.pallas_call(
        _rbf_tile_kernel,
        out_shape=jax.ShapeDtypeStruct((Mp, Np), jnp.float32),
        grid=grid,
        in_specs=[
            pl.BlockSpec((tm, D), lambda i, j: (i, 0)),
            pl.BlockSpec((D, tn), lambda i, j: (0, j)),
            pl.BlockSpec((tm, 1), lambda i, j: (i, 0)),
            pl.BlockSpec((1, tn), lambda i, j: (0, j)),
        ],
        out_specs=pl.BlockSpec((tm, tn), lambda i, j: (i, j)),
        compiler_params=pltpu.CompilerParams(
            dimension_semantics=("parallel", "parallel")),
    )(xi_s, xjt_s, ri, rj)

    return out[:Ni, :Nj]


def rbf_kernel_ref(xi, xj, length_scale, sigma_s, eps=1e-6):
    """Pure-JAX reference (mirrors the PyTorch forward, in f32)."""
    ls = jnp.clip(jnp.reshape(length_scale, ()).astype(jnp.float32) ** (-2),
                  eps, 1e5)
    var_s = jnp.clip(jnp.reshape(sigma_s, ()).astype(jnp.float32) ** 2,
                     eps, 1e5)
    xi = xi.astype(jnp.float32)
    xj = xj.astype(jnp.float32)
    xi_vi = xi * ls
    xj_vi = xj * ls
    dist = (jnp.sum(xi_vi * xi, -1)[:, None]
            + jnp.sum(xj_vi * xj, -1)[None, :]
            - 2.0 * xi_vi @ xj.T)
    return var_s * jnp.exp(-0.5 * dist)


if __name__ == "__main__":
    key = jax.random.PRNGKey(0)
    k_xi, k_xj, k_ls, k_sig = jax.random.split(key, 4)

    # Small, non-tile-aligned shapes to exercise the padding path.
    Ni, Nj, D = 500, 333, 8
    xi = jax.random.normal(k_xi, (Ni, D), dtype=jnp.float32)
    xj = jax.random.normal(k_xj, (Nj, D), dtype=jnp.float32)

    # Deterministic parameter init (torch.randn(1) equivalents).
    length_scale = jax.random.normal(k_ls, (1,), dtype=jnp.float32)
    sigma_s = jax.random.normal(k_sig, (1,), dtype=jnp.float32)

    out = rbf_kernel_pallas(xi, xj, length_scale, sigma_s)
    out = jax.block_until_ready(out)
    ref = rbf_kernel_ref(xi, xj, length_scale, sigma_s)
    assert out.shape == (Ni, Nj)
    assert jnp.allclose(out, ref, atol=2e-4, rtol=2e-4), "mismatch (random params)"

    # Second check with moderate, fixed parameters (non-degenerate exponent).
    length_scale2 = jnp.array([1.3], dtype=jnp.float32)
    sigma_s2 = jnp.array([0.7], dtype=jnp.float32)
    out2 = jax.block_until_ready(
        rbf_kernel_pallas(xi, xj, length_scale2, sigma_s2))
    ref2 = rbf_kernel_ref(xi, xj, length_scale2, sigma_s2)
    assert jnp.allclose(out2, ref2, atol=2e-4, rtol=2e-4), "mismatch (fixed params)"

    print("KERNEL_OK")
</pallas_src>

<mosaic_0001>
module attributes {stable_mosaic.version = 11 : i64} {
  func.func @_rbf_tile_kernel(%arg0: i32, %arg1: i32, %arg2: memref<256x8xf32, #tpu.memory_space<vmem>>, %arg3: memref<8x384xf32, #tpu.memory_space<vmem>>, %arg4: memref<256x1xf32, #tpu.memory_space<vmem>>, %arg5: memref<1x384xf32, #tpu.memory_space<vmem>>, %arg6: memref<256x384xf32, #tpu.memory_space<vmem>>) attributes {dimension_semantics = [#tpu.dimension_semantics<parallel>, #tpu.dimension_semantics<parallel>], iteration_bounds = array<i64: 2, 1>, scalar_prefetch = 0 : i64, scratch_operands = 0 : i64, tpu.core_type = #tpu.core_type<tc>, window_params = [{transform_indices = @transform_0, window_bounds = array<i64: 256, 8>}, {transform_indices = @transform_1, window_bounds = array<i64: 8, 384>}, {transform_indices = @transform_2, window_bounds = array<i64: 256, 1>}, {transform_indices = @transform_3, window_bounds = array<i64: 1, 384>}, {transform_indices = @transform_4, window_bounds = array<i64: 256, 384>}]} {
    %c0 = arith.constant 0 : index
    %c0_0 = arith.constant 0 : index
    %0 = vector.load %arg2[%c0, %c0_0] : memref<256x8xf32, #tpu.memory_space<vmem>>, vector<256x8xf32>
    %c0_1 = arith.constant 0 : index
    %c0_2 = arith.constant 0 : index
    %1 = vector.load %arg3[%c0_1, %c0_2] : memref<8x384xf32, #tpu.memory_space<vmem>>, vector<8x384xf32>
    %cst = arith.constant dense<0.000000e+00> : vector<256x384xf32>
    %2 = tpu.matmul %0, %1, %cst {dimension_numbers = #tpu.dot_dimension_numbers<[1], [0], [0], [1], [0, 0, 1, 1], [], []>} : vector<256x8xf32>, vector<8x384xf32>, vector<256x384xf32> -> vector<256x384xf32>
    %c0_3 = arith.constant 0 : index
    %c0_4 = arith.constant 0 : index
    %3 = vector.load %arg4[%c0_3, %c0_4] : memref<256x1xf32, #tpu.memory_space<vmem>>, vector<256x1xf32>
    %4 = vector.broadcast %3 : vector<256x1xf32> to vector<256x384xf32>
    %5 = arith.addf %2, %4 : vector<256x384xf32>
    %c0_5 = arith.constant 0 : index
    %c0_6 = arith.constant 0 : index
    %6 = vector.load %arg5[%c0_5, %c0_6] : memref<1x384xf32, #tpu.memory_space<vmem>>, vector<1x384xf32>
    %7 = vector.broadcast %6 : vector<1x384xf32> to vector<256x384xf32>
    %8 = arith.addf %5, %7 : vector<256x384xf32>
    %9 = math.exp %8 : vector<256x384xf32>
    %c0_7 = arith.constant 0 : index
    %c0_8 = arith.constant 0 : index
    %10 = vector.load %arg6[%c0_7, %c0_8] : memref<256x384xf32, #tpu.memory_space<vmem>>, vector<256x384xf32>
    tpu.vector_store %arg6[%c0_7, %c0_8], %9 {strides = array<i32>} : memref<256x384xf32, #tpu.memory_space<vmem>>, vector<256x384xf32>,
    return
  }
  func.func @transform_0(%arg0: i32, %arg1: i32) -> (i32, i32) {
    %c0_i32 = arith.constant 0 : i32
    %c0_i32_0 = arith.constant 0 : i32
    return %arg0, %c0_i32 : i32, i32
  }
  func.func @transform_1(%arg0: i32, %arg1: i32) -> (i32, i32) {
    %c0_i32 = arith.constant 0 : i32
    %c0_i32_0 = arith.constant 0 : i32
    return %c0_i32, %arg1 : i32, i32
  }
  func.func @transform_2(%arg0: i32, %arg1: i32) -> (i32, i32) {
    %c0_i32 = arith.constant 0 : i32
    %c0_i32_0 = arith.constant 0 : i32
    return %arg0, %c0_i32 : i32, i32
  }
  func.func @transform_3(%arg0: i32, %arg1: i32) -> (i32, i32) {
    %c0_i32 = arith.constant 0 : i32
    %c0_i32_0 = arith.constant 0 : i32
    return %c0_i32, %arg1 : i32, i32
  }
  func.func @transform_4(%arg0: i32, %arg1: i32) -> (i32, i32) {
    %c0_i32 = arith.constant 0 : i32
    return %arg0, %arg1 : i32, i32
  }
}

</mosaic_0001>

<llo_original>
// kernel: tpu_custom_call.1
$region0: #{tpu_custom_call.1}
  #allocation0 [shape = 'u32[]', space=smem, size = 0x4, offset = 0x4, fixed_abs, tag = 'smem constant byte address 0x4 - core index']
  #allocation1 [shape = 'u32[144,128]{1,0:T(1,128)}', space=vmem, size = 0x12000, scoped, tag = 'internal scratch']
  %s0 = inlined_call_operand.vmem [shape: f32[512,8], index: 0, kind: input, shape index: {}]
  %s1 = inlined_call_operand.vmem [shape: f32[8,384], index: 1, kind: input, shape index: {}]
  %s2 = inlined_call_operand.vmem [shape: f32[512,1], index: 2, kind: input, shape index: {}]
  %s3 = inlined_call_operand.vmem [shape: f32[1,384], index: 3, kind: input, shape index: {}]
  %s4 = inlined_call_operand.hbm [shape: f32[512,384], index: 4, kind: output, shape index: {}]
  %s5 = sld [smem:[#allocation0]]
  $region49: #{tpu_custom_call.1} parent=0
    _
  %s7 = ssub.s32 1, %s5
  %s8 = scalar_select 0, %s7, %s5
  $region1: #{tpu_custom_call.1} parent=0
    #allocation2 [shape = 'u8[786432]{0}', space=vmem, size = 0xc0000, scoped, tag = 'output window, operand 0']
    #allocation3 [shape = 's32[2]{0}', space=sflag, size = 0x8, scoped, tag = 'scoped memory for tpu_custom_call.1']
    %9 = vsyncpa [#allocation3], 0
    %s10 = scalar_lea.sflag [#allocation3], 1
    %11 = vsyncpa %s10, 0
    loop: start=0, step=1, limit=4
    $region2: #{tpu_custom_call.1} parent=1 // loop_pre_header
      _
    $region3: #{tpu_custom_call.1} parent=1 // loop_header
      %s13 = sphi 0, %s17
      %p14 = scmp.ge.s32.totalorder %s13, 4
      %s20 = sphi 0, %s32
      %s21 = sphi 0, %s28
      %s22 = sphi 0, %s20
      %s23 = sphi 0, %s21
      %s24 = sphi 0, %s22
      %s25 = sphi 0, %s23
      %s35 = sphi 0, %s37
      %s38 = sphi 0, %s35
      %s39 = sphi 0, %s38
      %s55 = sphi 0, %s39
      %s61 = sphi 0, %s63
      %s64 = sphi 0, %s61
      %s65 = sphi 0, %s64
      %s81 = sphi 0, %s65
      %s87 = sphi 0, %s89
      %s90 = sphi 0, %s87
      %s91 = sphi 0, %s90
      %s107 = sphi 0, %s91
      %s113 = sphi 0, %s115
      %s116 = sphi 0, %s113
      %s117 = sphi 0, %s116
      %s133 = sphi 0, %s117
      %s141 = sphi 0, %s143
      %s144 = sphi 0, %s141
      %s145 = sphi 0, %s144
      %s161 = sphi 0, %s145
    $region4: #{tpu_custom_call.1} parent=1 // loop_header_branch
      %16 = sbr.rel (%p14) target = $region8
    $region5: #{tpu_custom_call.1} parent=1 // loop_body
      %s18 = ssub.s32 %s13, 1
      %s19 = ssub.s32 %s13, 2
      %s26 = sadd.s32 1, %s21
      %p27 = scmp.ge.s32.totalorder %s26, 1
      %s28 = scalar_select %p27, 0, %s26
      %s29 = sadd.s32 1, %s20
      %s30 = scalar_select %p27, %s29, %s20
      %p31 = scmp.ge.s32.totalorder %s30, 2
      %s32 = scalar_select %p31, 0, %s30
      %s33 = ssub.s32 %s20, %s32
      %p34 = scmp.eq.s32.totalorder %s33, 0
      %s36 = sadd.s32 %s35, 1
      %s37 = scalar_select %p34, %s35, %s36
      %p40 = pneg %p34
      %p41 = scmp.eq.s32.totalorder %s13, 1
      %p42 = por %p40, %p41
      %p43 = scmp.ne.s32.totalorder %s35, %s38
      %p44 = scmp.eq.s32.totalorder %s13, 0
      %p45 = por %p43, %p44
      %p46 = scmp.ne.s32.totalorder %s35, %s38
      %p47 = scmp.eq.s32.totalorder %s18, 1
      %p48 = por %p46, %p47
      %p49 = scmp.ne.s32.totalorder %s38, %s39
      %p50 = scmp.eq.s32.totalorder %s18, 0
      %p51 = por %p49, %p50
      %p52 = scmp.ne.s32.totalorder %s38, %s39
      %p53 = scmp.eq.s32.totalorder %s19, 1
      %p54 = por %p52, %p53
      %p56 = scmp.ne.s32.totalorder %s39, %s55
      %p57 = scmp.eq.s32.totalorder %s19, 0
      %p58 = por %p56, %p57
      %s59 = ssub.s32 %s21, %s28
      %p60 = scmp.eq.s32.totalorder %s59, 0
      %s62 = sadd.s32 %s61, 1
      %s63 = scalar_select %p60, %s61, %s62
      %p66 = pneg %p60
      %p67 = scmp.eq.s32.totalorder %s13, 1
      %p68 = por %p66, %p67
      %p69 = scmp.ne.s32.totalorder %s61, %s64
      %p70 = scmp.eq.s32.totalorder %s13, 0
      %p71 = por %p69, %p70
      %p72 = scmp.ne.s32.totalorder %s61, %s64
      %p73 = scmp.eq.s32.totalorder %s18, 1
      %p74 = por %p72, %p73
      %p75 = scmp.ne.s32.totalorder %s64, %s65
      %p76 = scmp.eq.s32.totalorder %s18, 0
      %p77 = por %p75, %p76
      %p78 = scmp.ne.s32.totalorder %s64, %s65
      %p79 = scmp.eq.s32.totalorder %s19, 1
      %p80 = por %p78, %p79
      %p82 = scmp.ne.s32.totalorder %s65, %s81
      %p83 = scmp.eq.s32.totalorder %s19, 0
      %p84 = por %p82, %p83
      %s85 = ssub.s32 %s20, %s32
      %p86 = scmp.eq.s32.totalorder %s85, 0
      %s88 = sadd.s32 %s87, 1
      %s89 = scalar_select %p86, %s87, %s88
      %p92 = pneg %p86
      %p93 = scmp.eq.s32.totalorder %s13, 1
      %p94 = por %p92, %p93
      %p95 = scmp.ne.s32.totalorder %s87, %s90
      %p96 = scmp.eq.s32.totalorder %s13, 0
      %p97 = por %p95, %p96
      %p98 = scmp.ne.s32.totalorder %s87, %s90
      %p99 = scmp.eq.s32.totalorder %s18, 1
      %p100 = por %p98, %p99
      %p101 = scmp.ne.s32.totalorder %s90, %s91
      %p102 = scmp.eq.s32.totalorder %s18, 0
      %p103 = por %p101, %p102
      %p104 = scmp.ne.s32.totalorder %s90, %s91
      %p105 = scmp.eq.s32.totalorder %s19, 1
      %p106 = por %p104, %p105
      %p108 = scmp.ne.s32.totalorder %s91, %s107
      %p109 = scmp.eq.s32.totalorder %s19, 0
      %p110 = por %p108, %p109
      %s111 = ssub.s32 %s21, %s28
      %p112 = scmp.eq.s32.totalorder %s111, 0
      %s114 = sadd.s32 %s113, 1
      %s115 = scalar_select %p112, %s113, %s114
      %p118 = pneg %p112
      %p119 = scmp.eq.s32.totalorder %s13, 1
      %p120 = por %p118, %p119
      %p121 = scmp.ne.s32.totalorder %s113, %s116
      %p122 = scmp.eq.s32.totalorder %s13, 0
      %p123 = por %p121, %p122
      %p124 = scmp.ne.s32.totalorder %s113, %s116
      %p125 = scmp.eq.s32.totalorder %s18, 1
      %p126 = por %p124, %p125
      %p127 = scmp.ne.s32.totalorder %s116, %s117
      %p128 = scmp.eq.s32.totalorder %s18, 0
      %p129 = por %p127, %p128
      %p130 = scmp.ne.s32.totalorder %s116, %s117
      %p131 = scmp.eq.s32.totalorder %s19, 1
      %p132 = por %p130, %p131
      %p134 = scmp.ne.s32.totalorder %s117, %s133
      %p135 = scmp.eq.s32.totalorder %s19, 0
      %p136 = por %p134, %p135
      %s137 = ssub.s32 %s20, %s32
      %s138 = ssub.s32 %s21, %s28
      %s139 = sor.u32 %s137, %s138
      %p140 = scmp.eq.s32.totalorder %s139, 0
      %s142 = sadd.s32 %s141, 1
      %s143 = scalar_select %p140, %s141, %s142
      %p146 = pneg %p140
      %p147 = scmp.eq.s32.totalorder %s13, 1
      %p148 = por %p146, %p147
      %p149 = scmp.ne.s32.totalorder %s141, %s144
      %p150 = scmp.eq.s32.totalorder %s13, 0
      %p151 = por %p149, %p150
      %p152 = scmp.ne.s32.totalorder %s141, %s144
      %p153 = scmp.eq.s32.totalorder %s18, 1
      %p154 = por %p152, %p153
      %p155 = scmp.ne.s32.totalorder %s144, %s145
      %p156 = scmp.eq.s32.totalorder %s18, 0
      %p157 = por %p155, %p156
      %p158 = scmp.ne.s32.totalorder %s144, %s145
      %p159 = scmp.eq.s32.totalorder %s19, 1
      %p160 = por %p158, %p159
      %p162 = scmp.ne.s32.totalorder %s145, %s161
      %p163 = scmp.eq.s32.totalorder %s19, 0
      %p164 = por %p162, %p163
      %p165 = scmp.le.s32.totalorder 1, %s13
      %p166 = scmp.lt.s32.totalorder %s13, 3
      %p167 = pnand %p165, %p166
      %p168 = pneg %p167
      // Predicated region
      $region9: #{tpu_custom_call.1} parent=5 // pred_check
        _
      $region10: #{tpu_custom_call.1} parent=5 // pred_check_branch
        %170 = sbr.rel (%p167) target = $region12
      $region11: #{tpu_custom_call.1} parent=5 // pred_region
        %s171 = ssub.s32 %s13, 1
        // Predicated region
        $region13: #{tpu_custom_call.1} parent=11 // pred_check
          %p172 = pneg %p77
        $region14: #{tpu_custom_call.1} parent=11 // pred_check_branch
          %174 = sbr.rel (%p172) target = $region16
        $region15: #{tpu_custom_call.1} parent=11 // pred_region
          %s175 = smul.u32 3, %s23
          %p176 = scmp.lt.s32.totalorder %s175, 2
          %s177 = scalar_select %p176, %s175, 2
          %s178 = smul.addr %s177, 8
          %s179 = scalar_lea.vmem %s1, %s178
          %s180 = smul.u32 3, %s23
        $region16: #{tpu_custom_call.1} parent=11 // pred_fallthru
          _
        // Predicated region
        $region17: #{tpu_custom_call.1} parent=11 // pred_check
          %p181 = pneg %p129
        $region18: #{tpu_custom_call.1} parent=11 // pred_check_branch
          %183 = sbr.rel (%p181) target = $region20
        $region19: #{tpu_custom_call.1} parent=11 // pred_region
          %s184 = smul.u32 3, %s23
          %p185 = scmp.lt.s32.totalorder %s184, 2
          %s186 = scalar_select %p185, %s184, 2
          %s187 = scalar_lea.vmem %s3, %s186
          %s188 = smul.u32 3, %s23
        $region20: #{tpu_custom_call.1} parent=11 // pred_fallthru
          _
      $region12: #{tpu_custom_call.1} parent=5 // pred_fallthru
        _
      %p189 = scmp.lt.s32.totalorder %s13, 2
      // Predicated region
      $region21: #{tpu_custom_call.1} parent=5 // pred_check
        %p190 = pneg %p189
      $region22: #{tpu_custom_call.1} parent=5 // pred_check_branch
        %192 = sbr.rel (%p190) target = $region24
      $region23: #{tpu_custom_call.1} parent=5 // pred_region
        // Predicated region
        $region25: #{tpu_custom_call.1} parent=23 // pred_check
          %p193 = pneg %p45
        $region26: #{tpu_custom_call.1} parent=23 // pred_check_branch
          %195 = sbr.rel (%p193) target = $region28
        $region27: #{tpu_custom_call.1} parent=23 // pred_region
          %s196 = smul.u32 32, %s20
          %p197 = scmp.lt.s32.totalorder %s196, 63
          %s198 = scalar_select %p197, %s196, 63
          %s199 = smul.addr %s198, 8
          %s200 = scalar_lea.vmem %s0, %s199
          %s201 = smul.u32 32, %s20
        $region28: #{tpu_custom_call.1} parent=23 // pred_fallthru
          _
        // Predicated region
        $region29: #{tpu_custom_call.1} parent=23 // pred_check
          %p202 = pneg %p97
        $region30: #{tpu_custom_call.1} parent=23 // pred_check_branch
          %204 = sbr.rel (%p202) target = $region32
        $region31: #{tpu_custom_call.1} parent=23 // pred_region
          %s205 = smul.u32 32, %s20
          %p206 = scmp.lt.s32.totalorder %s205, 63
          %s207 = scalar_select %p206, %s205, 63
          %s208 = smul.addr %s207, 8
          %s209 = scalar_lea.vmem %s2, %s208
          %s210 = smul.u32 32, %s20
        $region32: #{tpu_custom_call.1} parent=23 // pred_fallthru
          _
      $region24: #{tpu_custom_call.1} parent=5 // pred_fallthru
        _
      %p211 = scmp.le.s32.totalorder 1, %s13
      %p212 = scmp.lt.s32.totalorder %s13, 3
      %p213 = pnand %p211, %p212
      %p214 = pneg %p213
      // Predicated region
      $region33: #{tpu_custom_call.1} parent=5 // pred_check
        _
      $region34: #{tpu_custom_call.1} parent=5 // pred_check_branch
        %216 = sbr.rel (%p213) target = $region36
      $region35: #{tpu_custom_call.1} parent=5 // pred_region
        %s217 = ssub.s32 %s13, 1
        %s218 = smul.u32 32, %s22
        %p219 = scmp.lt.s32.totalorder %s218, 63
        %s220 = scalar_select %p219, %s218, 63
        %s221 = smul.addr %s220, 8
        %s222 = scalar_lea.vmem %s0, %s221
        %p223 = pneg %p51
        %p224 = pneg %p48
        %s225 = smul.u32 3, %s23
        %p226 = scmp.lt.s32.totalorder %s225, 2
        %s227 = scalar_select %p226, %s225, 2
        %s228 = smul.addr %s227, 8
        %s229 = scalar_lea.vmem %s1, %s228
        %p230 = pneg %p77
        %p231 = pneg %p74
        %s232 = smul.u32 32, %s22
        %p233 = scmp.lt.s32.totalorder %s232, 63
        %s234 = scalar_select %p233, %s232, 63
        %s235 = smul.addr %s234, 8
        %s236 = scalar_lea.vmem %s2, %s235
        %p237 = pneg %p103
        %p238 = pneg %p100
        %s239 = smul.u32 3, %s23
        %p240 = scmp.lt.s32.totalorder %s239, 2
        %s241 = scalar_select %p240, %s239, 2
        %s242 = scalar_lea.vmem %s3, %s241
        %p243 = pneg %p129
        %p244 = pneg %p126
        %p245 = pneg %p157
        %p246 = pneg %p154
        %s247 = sand.u32 %s144, 1
        %s248 = scalar_lea.sflag [#allocation3], %s247
        %s249 = sand.u32 %s144, 1
        %s250 = smul.addr %s249, 768
        %s251 = scalar_lea.vmem [#allocation2], %s250
        %s252 = smul.u32 32, %s22
        %p253 = scmp.lt.s32.totalorder %s252, 63
        %s254 = scalar_select %p253, %s252, 63
        %s255 = smul.addr %s254, 8
        %s256 = scalar_lea.vmem %s0, %s255
        %s257 = smul.u32 32, %s22
        %s258 = smul.u32 3, %s23
        %p259 = scmp.lt.s32.totalorder %s258, 2
        %s260 = scalar_select %p259, %s258, 2
        %s261 = smul.addr %s260, 8
        %s262 = scalar_lea.vmem %s1, %s261
        %s263 = smul.u32 3, %s23
        %s264 = smul.u32 32, %s22
        %p265 = scmp.lt.s32.totalorder %s264, 63
        %s266 = scalar_select %p265, %s264, 63
        %s267 = smul.addr %s266, 8
        %s268 = scalar_lea.vmem %s2, %s267
        %s269 = smul.u32 32, %s22
        %s270 = smul.u32 3, %s23
        %p271 = scmp.lt.s32.totalorder %s270, 2
        %s272 = scalar_select %p271, %s270, 2
        %s273 = scalar_lea.vmem %s3, %s272
        %s274 = smul.u32 3, %s23
        %s275 = smul.u32 32, %s22
        %s276 = smul.u32 3, %s23
        %v277 = vld [vmem:[%s256] sm:$0xff]
        %v278 = vld [vmem:[%s256 + $0x8] sm:$0xff]
        %v279 = vld [vmem:[%s256 + $0x10] sm:$0xff]
        %v280 = vld [vmem:[%s256 + $0x18] sm:$0xff]
        %v281 = vld [vmem:[%s256 + $0x20] sm:$0xff]
        %v282 = vld [vmem:[%s256 + $0x28] sm:$0xff]
        %v283 = vld [vmem:[%s256 + $0x30] sm:$0xff]
        %v284 = vld [vmem:[%s256 + $0x38] sm:$0xff]
        %v285 = vld [vmem:[%s256 + $0x40] sm:$0xff]
        %v286 = vld [vmem:[%s256 + $0x48] sm:$0xff]
        %v287 = vld [vmem:[%s256 + $0x50] sm:$0xff]
        %v288 = vld [vmem:[%s256 + $0x58] sm:$0xff]
        %v289 = vld [vmem:[%s256 + $0x60] sm:$0xff]
        %v290 = vld [vmem:[%s256 + $0x68] sm:$0xff]
        %v291 = vld [vmem:[%s256 + $0x70] sm:$0xff]
        %v292 = vld [vmem:[%s256 + $0x78] sm:$0xff]
        %v293 = vld [vmem:[%s256 + $0x80] sm:$0xff]
        %v294 = vld [vmem:[%s256 + $0x88] sm:$0xff]
        %v295 = vld [vmem:[%s256 + $0x90] sm:$0xff]
        %v296 = vld [vmem:[%s256 + $0x98] sm:$0xff]
        %v297 = vld [vmem:[%s256 + $0xa0] sm:$0xff]
        %v298 = vld [vmem:[%s256 + $0xa8] sm:$0xff]
        %v299 = vld [vmem:[%s256 + $0xb0] sm:$0xff]
        %v300 = vld [vmem:[%s256 + $0xb8] sm:$0xff]
        %v301 = vld [vmem:[%s256 + $0xc0] sm:$0xff]
        %v302 = vld [vmem:[%s256 + $0xc8] sm:$0xff]
        %v303 = vld [vmem:[%s256 + $0xd0] sm:$0xff]
        %v304 = vld [vmem:[%s256 + $0xd8] sm:$0xff]
        %v305 = vld [vmem:[%s256 + $0xe0] sm:$0xff]
        %v306 = vld [vmem:[%s256 + $0xe8] sm:$0xff]
        %v307 = vld [vmem:[%s256 + $0xf0] sm:$0xff]
        %v308 = vld [vmem:[%s256 + $0xf8] sm:$0xff]
        %v309 = vld [vmem:[%s262] sm:$0xff]
        %v310 = vld [vmem:[%s262 + $0x8] sm:$0xff]
        %v311 = vld [vmem:[%s262 + $0x10] sm:$0xff]
        %v312 = vld [vmem:[%s268] sm:$0xff]
        %v313 = vld [vmem:[%s268 + $0x8] sm:$0xff]
        %v314 = vld [vmem:[%s268 + $0x10] sm:$0xff]
        %v315 = vld [vmem:[%s268 + $0x18] sm:$0xff]
        %v316 = vld [vmem:[%s268 + $0x20] sm:$0xff]
        %v317 = vld [vmem:[%s268 + $0x28] sm:$0xff]
        %v318 = vld [vmem:[%s268 + $0x30] sm:$0xff]
        %v319 = vld [vmem:[%s268 + $0x38] sm:$0xff]
        %v320 = vld [vmem:[%s268 + $0x40] sm:$0xff]
        %v321 = vld [vmem:[%s268 + $0x48] sm:$0xff]
        %v322 = vld [vmem:[%s268 + $0x50] sm:$0xff]
        %v323 = vld [vmem:[%s268 + $0x58] sm:$0xff]
        %v324 = vld [vmem:[%s268 + $0x60] sm:$0xff]
        %v325 = vld [vmem:[%s268 + $0x68] sm:$0xff]
        %v326 = vld [vmem:[%s268 + $0x70] sm:$0xff]
        %v327 = vld [vmem:[%s268 + $0x78] sm:$0xff]
        %v328 = vld [vmem:[%s268 + $0x80] sm:$0xff]
        %v329 = vld [vmem:[%s268 + $0x88] sm:$0xff]
        %v330 = vld [vmem:[%s268 + $0x90] sm:$0xff]
        %v331 = vld [vmem:[%s268 + $0x98] sm:$0xff]
        %v332 = vld [vmem:[%s268 + $0xa0] sm:$0xff]
        %v333 = vld [vmem:[%s268 + $0xa8] sm:$0xff]
        %v334 = vld [vmem:[%s268 + $0xb0] sm:$0xff]
        %v335 = vld [vmem:[%s268 + $0xb8] sm:$0xff]
        %v336 = vld [vmem:[%s268 + $0xc0] sm:$0xff]
        %v337 = vld [vmem:[%s268 + $0xc8] sm:$0xff]
        %v338 = vld [vmem:[%s268 + $0xd0] sm:$0xff]
        %v339 = vld [vmem:[%s268 + $0xd8] sm:$0xff]
        %v340 = vld [vmem:[%s268 + $0xe0] sm:$0xff]
        %v341 = vld [vmem:[%s268 + $0xe8] sm:$0xff]
        %v342 = vld [vmem:[%s268 + $0xf0] sm:$0xff]
        %v343 = vld [vmem:[%s268 + $0xf8] sm:$0xff]
        %345 = vset.pattern.permute.xlu0 0
        %346 = vperm.xlu0 %345, %v312
        %v347 = vpop.permute.xlu0 %346
        %350 = vset.pattern.permute.xlu0 0
        %351 = vperm.xlu0 %350, %v313
        %v352 = vpop.permute.xlu0 %351
        %355 = vset.pattern.permute.xlu0 0
        %356 = vperm.xlu0 %355, %v314
        %v357 = vpop.permute.xlu0 %356
        %360 = vset.pattern.permute.xlu0 0
        %361 = vperm.xlu0 %360, %v315
        %v362 = vpop.permute.xlu0 %361
        %365 = vset.pattern.permute.xlu0 0
        %366 = vperm.xlu0 %365, %v316
        %v367 = vpop.permute.xlu0 %366
        %370 = vset.pattern.permute.xlu0 0
        %371 = vperm.xlu0 %370, %v317
        %v372 = vpop.permute.xlu0 %371
        %375 = vset.pattern.permute.xlu0 0
        %376 = vperm.xlu0 %375, %v318
        %v377 = vpop.permute.xlu0 %376
        %380 = vset.pattern.permute.xlu0 0
        %381 = vperm.xlu0 %380, %v319
        %v382 = vpop.permute.xlu0 %381
        %385 = vset.pattern.permute.xlu0 0
        %386 = vperm.xlu0 %385, %v320
        %v387 = vpop.permute.xlu0 %386
        %390 = vset.pattern.permute.xlu0 0
        %391 = vperm.xlu0 %390, %v321
        %v392 = vpop.permute.xlu0 %391
        %395 = vset.pattern.permute.xlu0 0
        %396 = vperm.xlu0 %395, %v322
        %v397 = vpop.permute.xlu0 %396
        %400 = vset.pattern.permute.xlu0 0
        %401 = vperm.xlu0 %400, %v323
        %v402 = vpop.permute.xlu0 %401
        %405 = vset.pattern.permute.xlu0 0
        %406 = vperm.xlu0 %405, %v324
        %v407 = vpop.permute.xlu0 %406
        %410 = vset.pattern.permute.xlu0 0
        %411 = vperm.xlu0 %410, %v325
        %v412 = vpop.permute.xlu0 %411
        %415 = vset.pattern.permute.xlu0 0
        %416 = vperm.xlu0 %415, %v326
        %v417 = vpop.permute.xlu0 %416
        %420 = vset.pattern.permute.xlu0 0
        %421 = vperm.xlu0 %420, %v327
        %v422 = vpop.permute.xlu0 %421
        %425 = vset.pattern.permute.xlu0 0
        %426 = vperm.xlu0 %425, %v328
        %v427 = vpop.permute.xlu0 %426
        %430 = vset.pattern.permute.xlu0 0
        %431 = vperm.xlu0 %430, %v329
        %v432 = vpop.permute.xlu0 %431
        %435 = vset.pattern.permute.xlu0 0
        %436 = vperm.xlu0 %435, %v330
        %v437 = vpop.permute.xlu0 %436
        %440 = vset.pattern.permute.xlu0 0
        %441 = vperm.xlu0 %440, %v331
        %v442 = vpop.permute.xlu0 %441
        %445 = vset.pattern.permute.xlu0 0
        %446 = vperm.xlu0 %445, %v332
        %v447 = vpop.permute.xlu0 %446
        %450 = vset.pattern.permute.xlu0 0
        %451 = vperm.xlu0 %450, %v333
        %v452 = vpop.permute.xlu0 %451
        %455 = vset.pattern.permute.xlu0 0
        %456 = vperm.xlu0 %455, %v334
        %v457 = vpop.permute.xlu0 %456
        %460 = vset.pattern.permute.xlu0 0
        %461 = vperm.xlu0 %460, %v335
        %v462 = vpop.permute.xlu0 %461
        %465 = vset.pattern.permute.xlu0 0
        %466 = vperm.xlu0 %465, %v336
        %v467 = vpop.permute.xlu0 %466
        %470 = vset.pattern.permute.xlu0 0
        %471 = vperm.xlu0 %470, %v337
        %v472 = vpop.permute.xlu0 %471
        %475 = vset.pattern.permute.xlu0 0
        %476 = vperm.xlu0 %475, %v338
        %v477 = vpop.permute.xlu0 %476
        %480 = vset.pattern.permute.xlu0 0
        %481 = vperm.xlu0 %480, %v339
        %v482 = vpop.permute.xlu0 %481
        %485 = vset.pattern.permute.xlu0 0
        %486 = vperm.xlu0 %485, %v340
        %v487 = vpop.permute.xlu0 %486
        %490 = vset.pattern.permute.xlu0 0
        %491 = vperm.xlu0 %490, %v341
        %v492 = vpop.permute.xlu0 %491
        %495 = vset.pattern.permute.xlu0 0
        %496 = vperm.xlu0 %495, %v342
        %v497 = vpop.permute.xlu0 %496
        %500 = vset.pattern.permute.xlu0 0
        %501 = vperm.xlu0 %500, %v343
        %v502 = vpop.permute.xlu0 %501
        %vm504 = vcmask 64512
        %v506 = vsel %vm504, %v277, 0
        %v509 = vsel %vm504, %v278, 0
        %v512 = vsel %vm504, %v279, 0
        %v515 = vsel %vm504, %v280, 0
        %v518 = vsel %vm504, %v281, 0
        %v521 = vsel %vm504, %v282, 0
        %v524 = vsel %vm504, %v283, 0
        %v527 = vsel %vm504, %v284, 0
        %v530 = vsel %vm504, %v285, 0
        %v533 = vsel %vm504, %v286, 0
        %v536 = vsel %vm504, %v287, 0
        %v539 = vsel %vm504, %v288, 0
        %v542 = vsel %vm504, %v289, 0
        %v545 = vsel %vm504, %v290, 0
        %v548 = vsel %vm504, %v291, 0
        %v551 = vsel %vm504, %v292, 0
        %v554 = vsel %vm504, %v293, 0
        %v557 = vsel %vm504, %v294, 0
        %v560 = vsel %vm504, %v295, 0
        %v563 = vsel %vm504, %v296, 0
        %v566 = vsel %vm504, %v297, 0
        %v569 = vsel %vm504, %v298, 0
        %v572 = vsel %vm504, %v299, 0
        %v575 = vsel %vm504, %v300, 0
        %v578 = vsel %vm504, %v301, 0
        %v581 = vsel %vm504, %v302, 0
        %v584 = vsel %vm504, %v303, 0
        %v587 = vsel %vm504, %v304, 0
        %v590 = vsel %vm504, %v305, 0
        %v593 = vsel %vm504, %v306, 0
        %v596 = vsel %vm504, %v307, 0
        %v599 = vsel %vm504, %v308, 0
        %601 = vmatprep.subr.mxu0 %v310
        %602 = vmatpush1.msra.mxu0 %v309
        %603 = vmatprep.subr.mxu0 0.0
        %604 = vmatpush1.msra.mxu0 0.0
        %605 = vmatprep.subr.mxu0 0.0
        %606 = vmatpush1.msra.mxu0 0.0
        %607 = vmatprep.subr.mxu0 0.0
        %608 = vmatpush1.msra.mxu0 0.0
        %609 = vmatprep.subr.mxu0 0.0
        %610 = vmatpush1.msra.mxu0 0.0
        %611 = vmatprep.subr.mxu0 0.0
        %612 = vmatpush1.msra.mxu0 0.0
        %613 = vmatprep.subr.mxu0 0.0
        %614 = vmatpush1.msra.mxu0 0.0
        %615 = vmatprep.subr.mxu0 0.0
        %616 = vmatpush1.msra.mxu0 0.0
        %617 = vmatprep.subr.mxu0 0.0
        %618 = vmatpush1.msra.mxu0 0.0
        %619 = vmatprep.subr.mxu0 0.0
        %620 = vmatpush1.msra.mxu0 0.0
        %621 = vmatprep.subr.mxu0 0.0
        %622 = vmatpush1.msra.mxu0 0.0
        %623 = vmatprep.subr.mxu0 0.0
        %624 = vmatpush1.msra.mxu0 0.0
        %625 = vmatprep.subr.mxu0 0.0
        %626 = vmatpush1.msra.mxu0 0.0
        %627 = vmatprep.subr.mxu0 0.0
        %628 = vmatpush1.msra.mxu0 0.0
        %629 = vmatprep.subr.mxu0 0.0
        %630 = vmatpush1.msra.mxu0 0.0
        %631 = vmatprep.subr.mxu0 0.0
        %632 = vmatpush1.msra.mxu0 0.0
        %633 = vmatprep.subr.mxu0 0.0
        %634 = vmatpush1.msra.mxu0 0.0
        %635 = vmatprep.subr.mxu0 0.0
        %636 = vmatpush1.msra.mxu0 0.0
        %637 = vmatprep.subr.mxu0 0.0
        %638 = vmatpush1.msra.mxu0 0.0
        %639 = vmatprep.subr.mxu0 0.0
        %640 = vmatpush1.msra.mxu0 0.0
        %641 = vmatprep.subr.mxu0 0.0
        %642 = vmatpush1.msra.mxu0 0.0
        %643 = vmatprep.subr.mxu0 0.0
        %644 = vmatpush1.msra.mxu0 0.0
        %645 = vmatprep.subr.mxu0 0.0
        %646 = vmatpush1.msra.mxu0 0.0
        %647 = vmatprep.subr.mxu0 0.0
        %648 = vmatpush1.msra.mxu0 0.0
        %649 = vmatprep.subr.mxu0 0.0
        %650 = vmatpush1.msra.mxu0 0.0
        %651 = vmatprep.subr.mxu0 0.0
        %652 = vmatpush1.msra.mxu0 0.0
        %653 = vmatprep.subr.mxu0 0.0
        %654 = vmatpush1.msra.mxu0 0.0
        %655 = vmatprep.subr.mxu0 0.0
        %656 = vmatpush1.msra.mxu0 0.0
        %657 = vmatprep.subr.mxu0 0.0
        %658 = vmatpush1.msra.mxu0 0.0
        %659 = vmatprep.subr.mxu0 0.0
        %660 = vmatpush1.msra.mxu0 0.0
        %661 = vmatprep.subr.mxu0 0.0
        %662 = vmatpush1.msra.mxu0 0.0
        %663 = vmatprep.subr.mxu0 0.0
        %664 = vmatpush1.msra.mxu0 0.0
        %665 = vmatprep.mubr.f32.mxu0 0.0
        %666 = vmatmul.mubr.f32.gmra.mrb[0].mxu0 %v506
        %v667 = vpop.f32.mrb[0].mxu0
        %v668 = vadd.f32 %v347, %v667
        %v669 = vpop.f32.mrb[0].mxu0
        %v670 = vadd.f32 %v347, %v669
        %671 = vmatprep.mubr.f32.mxu0 0.0
        %672 = vmatmul.mubr.f32.gmra.mrb[0].mxu0 %v509
        %v673 = vpop.f32.mrb[0].mxu0
        %v674 = vadd.f32 %v352, %v673
        %v675 = vpop.f32.mrb[0].mxu0
        %v676 = vadd.f32 %v352, %v675
        %677 = vmatprep.mubr.f32.mxu0 0.0
        %678 = vmatmul.mubr.f32.gmra.mrb[0].mxu0 %v512
        %v679 = vpop.f32.mrb[0].mxu0
        %v680 = vadd.f32 %v357, %v679
        %v681 = vpop.f32.mrb[0].mxu0
        %v682 = vadd.f32 %v357, %v681
        %683 = vmatprep.mubr.f32.mxu0 0.0
        %684 = vmatmul.mubr.f32.gmra.mrb[0].mxu0 %v515
        %v685 = vpop.f32.mrb[0].mxu0
        %v686 = vadd.f32 %v362, %v685
        %v687 = vpop.f32.mrb[0].mxu0
        %v688 = vadd.f32 %v362, %v687
        %689 = vmatprep.mubr.f32.mxu0 0.0
        %690 = vmatmul.mubr.f32.gmra.mrb[0].mxu0 %v518
        %v691 = vpop.f32.mrb[0].mxu0
        %v692 = vadd.f32 %v367, %v691
        %v693 = vpop.f32.mrb[0].mxu0
        %v694 = vadd.f32 %v367, %v693
        %695 = vmatprep.mubr.f32.mxu0 0.0
        %696 = vmatmul.mubr.f32.gmra.mrb[0].mxu0 %v521
        %v697 = vpop.f32.mrb[0].mxu0
        %v698 = vadd.f32 %v372, %v697
        %v699 = vpop.f32.mrb[0].mxu0
        %v700 = vadd.f32 %v372, %v699
        %701 = vmatprep.mubr.f32.mxu0 0.0
        %702 = vmatmul.mubr.f32.gmra.mrb[0].mxu0 %v524
        %v703 = vpop.f32.mrb[0].mxu0
        %v704 = vadd.f32 %v377, %v703
        %v705 = vpop.f32.mrb[0].mxu0
        %v706 = vadd.f32 %v377, %v705
        %707 = vmatprep.mubr.f32.mxu0 0.0
        %708 = vmatmul.mubr.f32.gmra.mrb[0].mxu0 %v527
        %v709 = vpop.f32.mrb[0].mxu0
        %v710 = vadd.f32 %v382, %v709
        %v711 = vpop.f32.mrb[0].mxu0
        %v712 = vadd.f32 %v382, %v711
        %713 = vmatprep.mubr.f32.mxu0 0.0
        %714 = vmatmul.mubr.f32.gmra.mrb[0].mxu0 %v530
        %v715 = vpop.f32.mrb[0].mxu0
        %v716 = vadd.f32 %v387, %v715
        %v717 = vpop.f32.mrb[0].mxu0
        %v718 = vadd.f32 %v387, %v717
        %719 = vmatprep.mubr.f32.mxu0 0.0
        %720 = vmatmul.mubr.f32.gmra.mrb[0].mxu0 %v533
        %v721 = vpop.f32.mrb[0].mxu0
        %v722 = vadd.f32 %v392, %v721
        %v723 = vpop.f32.mrb[0].mxu0
        %v724 = vadd.f32 %v392, %v723
        %725 = vmatprep.mubr.f32.mxu0 0.0
        %726 = vmatmul.mubr.f32.gmra.mrb[0].mxu0 %v536
        %v727 = vpop.f32.mrb[0].mxu0
        %v728 = vadd.f32 %v397, %v727
        %v729 = vpop.f32.mrb[0].mxu0
        %v730 = vadd.f32 %v397, %v729
        %731 = vmatprep.mubr.f32.mxu0 0.0
        %732 = vmatmul.mubr.f32.gmra.mrb[0].mxu0 %v539
        %v733 = vpop.f32.mrb[0].mxu0
        %v734 = vadd.f32 %v402, %v733
        %v735 = vpop.f32.mrb[0].mxu0
        %v736 = vadd.f32 %v402, %v735
        %737 = vmatprep.mubr.f32.mxu0 0.0
        %738 = vmatmul.mubr.f32.gmra.mrb[0].mxu0 %v542
        %v739 = vpop.f32.mrb[0].mxu0
        %v740 = vadd.f32 %v407, %v739
        %v741 = vpop.f32.mrb[0].mxu0
        %v742 = vadd.f32 %v407, %v741
        %743 = vmatprep.mubr.f32.mxu0 0.0
        %744 = vmatmul.mubr.f32.gmra.mrb[0].mxu0 %v545
        %v745 = vpop.f32.mrb[0].mxu0
        %v746 = vadd.f32 %v412, %v745
        %v747 = vpop.f32.mrb[0].mxu0
        %v748 = vadd.f32 %v412, %v747
        %749 = vmatprep.mubr.f32.mxu0 0.0
        %750 = vmatmul.mubr.f32.gmra.mrb[0].mxu0 %v548
        %v751 = vpop.f32.mrb[0].mxu0
        %v752 = vadd.f32 %v417, %v751
        %v753 = vpop.f32.mrb[0].mxu0
        %v754 = vadd.f32 %v417, %v753
        %755 = vmatprep.mubr.f32.mxu0 0.0
        %756 = vmatmul.mubr.f32.gmra.mrb[0].mxu0 %v551
        %v757 = vpop.f32.mrb[0].mxu0
        %v758 = vadd.f32 %v422, %v757
        %v759 = vpop.f32.mrb[0].mxu0
        %v760 = vadd.f32 %v422, %v759
        %761 = vmatprep.mubr.f32.mxu0 0.0
        %762 = vmatmul.mubr.f32.gmra.mrb[0].mxu0 %v554
        %v763 = vpop.f32.mrb[0].mxu0
        %v764 = vadd.f32 %v427, %v763
        %v765 = vpop.f32.mrb[0].mxu0
        %v766 = vadd.f32 %v427, %v765
        %767 = vmatprep.mubr.f32.mxu0 0.0
        %768 = vmatmul.mubr.f32.gmra.mrb[0].mxu0 %v557
        %v769 = vpop.f32.mrb[0].mxu0
        %v770 = vadd.f32 %v432, %v769
        %v771 = vpop.f32.mrb[0].mxu0
        %v772 = vadd.f32 %v432, %v771
        %773 = vmatprep.mubr.f32.mxu0 0.0
        %774 = vmatmul.mubr.f32.gmra.mrb[0].mxu0 %v560
        %v775 = vpop.f32.mrb[0].mxu0
        %v776 = vadd.f32 %v437, %v775
        %v777 = vpop.f32.mrb[0].mxu0
        %v778 = vadd.f32 %v437, %v777
        %779 = vmatprep.mubr.f32.mxu0 0.0
        %780 = vmatmul.mubr.f32.gmra.mrb[0].mxu0 %v563
        %v781 = vpop.f32.mrb[0].mxu0
        %v782 = vadd.f32 %v442, %v781
        %v783 = vpop.f32.mrb[0].mxu0
        %v784 = vadd.f32 %v442, %v783
        %785 = vmatprep.mubr.f32.mxu0 0.0
        %786 = vmatmul.mubr.f32.gmra.mrb[0].mxu0 %v566
        %v787 = vpop.f32.mrb[0].mxu0
        %v788 = vadd.f32 %v447, %v787
        %v789 = vpop.f32.mrb[0].mxu0
        %v790 = vadd.f32 %v447, %v789
        %791 = vmatprep.mubr.f32.mxu0 0.0
        %792 = vmatmul.mubr.f32.gmra.mrb[0].mxu0 %v569
        %v793 = vpop.f32.mrb[0].mxu0
        %v794 = vadd.f32 %v452, %v793
        %v795 = vpop.f32.mrb[0].mxu0
        %v796 = vadd.f32 %v452, %v795
        %797 = vmatprep.mubr.f32.mxu0 0.0
        %798 = vmatmul.mubr.f32.gmra.mrb[0].mxu0 %v572
        %v799 = vpop.f32.mrb[0].mxu0
        %v800 = vadd.f32 %v457, %v799
        %v801 = vpop.f32.mrb[0].mxu0
        %v802 = vadd.f32 %v457, %v801
        %803 = vmatprep.mubr.f32.mxu0 0.0
        %804 = vmatmul.mubr.f32.gmra.mrb[0].mxu0 %v575
        %v805 = vpop.f32.mrb[0].mxu0
        %v806 = vadd.f32 %v462, %v805
        %v807 = vpop.f32.mrb[0].mxu0
        %v808 = vadd.f32 %v462, %v807
        %809 = vmatprep.mubr.f32.mxu0 0.0
        %810 = vmatmul.mubr.f32.gmra.mrb[0].mxu0 %v578
        %v811 = vpop.f32.mrb[0].mxu0
        %v812 = vadd.f32 %v467, %v811
        %v813 = vpop.f32.mrb[0].mxu0
        %v814 = vadd.f32 %v467, %v813
        %815 = vmatprep.mubr.f32.mxu0 0.0
        %816 = vmatmul.mubr.f32.gmra.mrb[0].mxu0 %v581
        %v817 = vpop.f32.mrb[0].mxu0
        %v818 = vadd.f32 %v472, %v817
        %v819 = vpop.f32.mrb[0].mxu0
        %v820 = vadd.f32 %v472, %v819
        %821 = vmatprep.mubr.f32.mxu0 0.0
        %822 = vmatmul.mubr.f32.gmra.mrb[0].mxu0 %v584
        %v823 = vpop.f32.mrb[0].mxu0
        %v824 = vadd.f32 %v477, %v823
        %v825 = vpop.f32.mrb[0].mxu0
        %v826 = vadd.f32 %v477, %v825
        %827 = vmatprep.mubr.f32.mxu0 0.0
        %828 = vmatmul.mubr.f32.gmra.mrb[0].mxu0 %v587
        %v829 = vpop.f32.mrb[0].mxu0
        %v830 = vadd.f32 %v482, %v829
        %v831 = vpop.f32.mrb[0].mxu0
        %v832 = vadd.f32 %v482, %v831
        %833 = vmatprep.mubr.f32.mxu0 0.0
        %834 = vmatmul.mubr.f32.gmra.mrb[0].mxu0 %v590
        %v835 = vpop.f32.mrb[0].mxu0
        %v836 = vadd.f32 %v487, %v835
        %v837 = vpop.f32.mrb[0].mxu0
        %v838 = vadd.f32 %v487, %v837
        %839 = vmatprep.mubr.f32.mxu0 0.0
        %840 = vmatmul.mubr.f32.gmra.mrb[0].mxu0 %v593
        %v841 = vpop.f32.mrb[0].mxu0
        %v842 = vadd.f32 %v492, %v841
        %v843 = vpop.f32.mrb[0].mxu0
        %v844 = vadd.f32 %v492, %v843
        %845 = vmatprep.mubr.f32.mxu0 0.0
        %846 = vmatmul.mubr.f32.gmra.mrb[0].mxu0 %v596
        %v847 = vpop.f32.mrb[0].mxu0
        %v848 = vadd.f32 %v497, %v847
        %v849 = vpop.f32.mrb[0].mxu0
        %v850 = vadd.f32 %v497, %v849
        %851 = vmatprep.mubr.f32.mxu0 0.0
        %852 = vmatmul.mubr.f32.gmra.mrb[0].mxu0 %v599
        %v853 = vpop.f32.mrb[0].mxu0
        %v854 = vadd.f32 %v502, %v853
        %v855 = vpop.f32.mrb[0].mxu0
        %v856 = vadd.f32 %v502, %v855
        %857 = vdwg.mxu0
        %858 = vmatprep.subr.mxu0 0.0
        %859 = vmatpush1.msra.mxu0 %v311
        %860 = vmatprep.subr.mxu0 0.0
        %861 = vmatpush1.msra.mxu0 0.0
        %862 = vmatprep.subr.mxu0 0.0
        %863 = vmatpush1.msra.mxu0 0.0
        %864 = vmatprep.subr.mxu0 0.0
        %865 = vmatpush1.msra.mxu0 0.0
        %866 = vmatprep.subr.mxu0 0.0
        %867 = vmatpush1.msra.mxu0 0.0
        %868 = vmatprep.subr.mxu0 0.0
        %869 = vmatpush1.msra.mxu0 0.0
        %870 = vmatprep.subr.mxu0 0.0
        %871 = vmatpush1.msra.mxu0 0.0
        %872 = vmatprep.subr.mxu0 0.0
        %873 = vmatpush1.msra.mxu0 0.0
        %874 = vmatprep.subr.mxu0 0.0
        %875 = vmatpush1.msra.mxu0 0.0
        %876 = vmatprep.subr.mxu0 0.0
        %877 = vmatpush1.msra.mxu0 0.0
        %878 = vmatprep.subr.mxu0 0.0
        %879 = vmatpush1.msra.mxu0 0.0
        %880 = vmatprep.subr.mxu0 0.0
        %881 = vmatpush1.msra.mxu0 0.0
        %882 = vmatprep.subr.mxu0 0.0
        %883 = vmatpush1.msra.mxu0 0.0
        %884 = vmatprep.subr.mxu0 0.0
        %885 = vmatpush1.msra.mxu0 0.0
        %886 = vmatprep.subr.mxu0 0.0
        %887 = vmatpush1.msra.mxu0 0.0
        %888 = vmatprep.subr.mxu0 0.0
        %889 = vmatpush1.msra.mxu0 0.0
        %890 = vmatprep.subr.mxu0 0.0
        %891 = vmatpush1.msra.mxu0 0.0
        %892 = vmatprep.subr.mxu0 0.0
        %893 = vmatpush1.msra.mxu0 0.0
        %894 = vmatprep.subr.mxu0 0.0
        %895 = vmatpush1.msra.mxu0 0.0
        %896 = vmatprep.subr.mxu0 0.0
        %897 = vmatpush1.msra.mxu0 0.0
        %898 = vmatprep.subr.mxu0 0.0
        %899 = vmatpush1.msra.mxu0 0.0
        %900 = vmatprep.subr.mxu0 0.0
        %901 = vmatpush1.msra.mxu0 0.0
        %902 = vmatprep.subr.mxu0 0.0
        %903 = vmatpush1.msra.mxu0 0.0
        %904 = vmatprep.subr.mxu0 0.0
        %905 = vmatpush1.msra.mxu0 0.0
        %906 = vmatprep.subr.mxu0 0.0
        %907 = vmatpush1.msra.mxu0 0.0
        %908 = vmatprep.subr.mxu0 0.0
        %909 = vmatpush1.msra.mxu0 0.0
        %910 = vmatprep.subr.mxu0 0.0
        %911 = vmatpush1.msra.mxu0 0.0
        %912 = vmatprep.subr.mxu0 0.0
        %913 = vmatpush1.msra.mxu0 0.0
        %914 = vmatprep.subr.mxu0 0.0
        %915 = vmatpush1.msra.mxu0 0.0
        %916 = vmatprep.subr.mxu0 0.0
        %917 = vmatpush1.msra.mxu0 0.0
        %918 = vmatprep.subr.mxu0 0.0
        %919 = vmatpush1.msra.mxu0 0.0
        %920 = vmatprep.subr.mxu0 0.0
        %921 = vmatpush1.msra.mxu0 0.0
        %922 = vmatprep.mubr.f32.mxu0 0.0
        %923 = vmatmul.mubr.f32.gmra.mrb[0].mxu0 %v506
        %v924 = vpop.f32.mrb[0].mxu0
        %v925 = vadd.f32 %v347, %v924
        %v926 = vpop.f32.mrb[0].mxu0
        %927 = vmatprep.mubr.f32.mxu0 0.0
        %928 = vmatmul.mubr.f32.gmra.mrb[0].mxu0 %v509
        %v929 = vpop.f32.mrb[0].mxu0
        %v930 = vadd.f32 %v352, %v929
        %v931 = vpop.f32.mrb[0].mxu0
        %932 = vmatprep.mubr.f32.mxu0 0.0
        %933 = vmatmul.mubr.f32.gmra.mrb[0].mxu0 %v512
        %v934 = vpop.f32.mrb[0].mxu0
        %v935 = vadd.f32 %v357, %v934
        %v936 = vpop.f32.mrb[0].mxu0
        %937 = vmatprep.mubr.f32.mxu0 0.0
        %938 = vmatmul.mubr.f32.gmra.mrb[0].mxu0 %v515
        %v939 = vpop.f32.mrb[0].mxu0
        %v940 = vadd.f32 %v362, %v939
        %v941 = vpop.f32.mrb[0].mxu0
        %942 = vmatprep.mubr.f32.mxu0 0.0
        %943 = vmatmul.mubr.f32.gmra.mrb[0].mxu0 %v518
        %v944 = vpop.f32.mrb[0].mxu0
        %v945 = vadd.f32 %v367, %v944
        %v946 = vpop.f32.mrb[0].mxu0
        %947 = vmatprep.mubr.f32.mxu0 0.0
        %948 = vmatmul.mubr.f32.gmra.mrb[0].mxu0 %v521
        %v949 = vpop.f32.mrb[0].mxu0
        %v950 = vadd.f32 %v372, %v949
        %v951 = vpop.f32.mrb[0].mxu0
        %952 = vmatprep.mubr.f32.mxu0 0.0
        %953 = vmatmul.mubr.f32.gmra.mrb[0].mxu0 %v524
        %v954 = vpop.f32.mrb[0].mxu0
        %v955 = vadd.f32 %v377, %v954
        %v956 = vpop.f32.mrb[0].mxu0
        %957 = vmatprep.mubr.f32.mxu0 0.0
        %958 = vmatmul.mubr.f32.gmra.mrb[0].mxu0 %v527
        %v959 = vpop.f32.mrb[0].mxu0
        %v960 = vadd.f32 %v382, %v959
        %v961 = vpop.f32.mrb[0].mxu0
        %962 = vmatprep.mubr.f32.mxu0 0.0
        %963 = vmatmul.mubr.f32.gmra.mrb[0].mxu0 %v530
        %v964 = vpop.f32.mrb[0].mxu0
        %v965 = vadd.f32 %v387, %v964
        %v966 = vpop.f32.mrb[0].mxu0
        %967 = vmatprep.mubr.f32.mxu0 0.0
        %968 = vmatmul.mubr.f32.gmra.mrb[0].mxu0 %v533
        %v969 = vpop.f32.mrb[0].mxu0
        %v970 = vadd.f32 %v392, %v969
        %v971 = vpop.f32.mrb[0].mxu0
        %972 = vmatprep.mubr.f32.mxu0 0.0
        %973 = vmatmul.mubr.f32.gmra.mrb[0].mxu0 %v536
        %v974 = vpop.f32.mrb[0].mxu0
        %v975 = vadd.f32 %v397, %v974
        %v976 = vpop.f32.mrb[0].mxu0
        %977 = vmatprep.mubr.f32.mxu0 0.0
        %978 = vmatmul.mubr.f32.gmra.mrb[0].mxu0 %v539
        %v979 = vpop.f32.mrb[0].mxu0
        %v980 = vadd.f32 %v402, %v979
        %v981 = vpop.f32.mrb[0].mxu0
        %982 = vmatprep.mubr.f32.mxu0 0.0
        %983 = vmatmul.mubr.f32.gmra.mrb[0].mxu0 %v542
        %v984 = vpop.f32.mrb[0].mxu0
        %v985 = vadd.f32 %v407, %v984
        %v986 = vpop.f32.mrb[0].mxu0
        %987 = vmatprep.mubr.f32.mxu0 0.0
        %988 = vmatmul.mubr.f32.gmra.mrb[0].mxu0 %v545
        %v989 = vpop.f32.mrb[0].mxu0
        %v990 = vadd.f32 %v412, %v989
        %v991 = vpop.f32.mrb[0].mxu0
        %992 = vmatprep.mubr.f32.mxu0 0.0
        %993 = vmatmul.mubr.f32.gmra.mrb[0].mxu0 %v548
        %v994 = vpop.f32.mrb[0].mxu0
        %v995 = vadd.f32 %v417, %v994
        %v996 = vpop.f32.mrb[0].mxu0
        %997 = vmatprep.mubr.f32.mxu0 0.0
        %998 = vmatmul.mubr.f32.gmra.mrb[0].mxu0 %v551
        %v999 = vpop.f32.mrb[0].mxu0
        %v1000 = vadd.f32 %v422, %v999
        %v1001 = vpop.f32.mrb[0].mxu0
        %1002 = vmatprep.mubr.f32.mxu0 0.0
        %1003 = vmatmul.mubr.f32.gmra.mrb[0].mxu0 %v554
        %v1004 = vpop.f32.mrb[0].mxu0
        %v1005 = vadd.f32 %v427, %v1004
        %v1006 = vpop.f32.mrb[0].mxu0
        %1007 = vmatprep.mubr.f32.mxu0 0.0
        %1008 = vmatmul.mubr.f32.gmra.mrb[0].mxu0 %v557
        %v1009 = vpop.f32.mrb[0].mxu0
        %v1010 = vadd.f32 %v432, %v1009
        %v1011 = vpop.f32.mrb[0].mxu0
        %1012 = vmatprep.mubr.f32.mxu0 0.0
        %1013 = vmatmul.mubr.f32.gmra.mrb[0].mxu0 %v560
        %v1014 = vpop.f32.mrb[0].mxu0
        %v1015 = vadd.f32 %v437, %v1014
        %v1016 = vpop.f32.mrb[0].mxu0
        %1017 = vmatprep.mubr.f32.mxu0 0.0
        %1018 = vmatmul.mubr.f32.gmra.mrb[0].mxu0 %v563
        %v1019 = vpop.f32.mrb[0].mxu0
        %v1020 = vadd.f32 %v442, %v1019
        %v1021 = vpop.f32.mrb[0].mxu0
        %1022 = vmatprep.mubr.f32.mxu0 0.0
        %1023 = vmatmul.mubr.f32.gmra.mrb[0].mxu0 %v566
        %v1024 = vpop.f32.mrb[0].mxu0
        %v1025 = vadd.f32 %v447, %v1024
        %v1026 = vpop.f32.mrb[0].mxu0
        %1027 = vmatprep.mubr.f32.mxu0 0.0
        %1028 = vmatmul.mubr.f32.gmra.mrb[0].mxu0 %v569
        %v1029 = vpop.f32.mrb[0].mxu0
        %v1030 = vadd.f32 %v452, %v1029
        %v1031 = vpop.f32.mrb[0].mxu0
        %1032 = vmatprep.mubr.f32.mxu0 0.0
        %1033 = vmatmul.mubr.f32.gmra.mrb[0].mxu0 %v572
        %v1034 = vpop.f32.mrb[0].mxu0
        %v1035 = vadd.f32 %v457, %v1034
        %v1036 = vpop.f32.mrb[0].mxu0
        %1037 = vmatprep.mubr.f32.mxu0 0.0
        %1038 = vmatmul.mubr.f32.gmra.mrb[0].mxu0 %v575
        %v1039 = vpop.f32.mrb[0].mxu0
        %v1040 = vadd.f32 %v462, %v1039
        %v1041 = vpop.f32.mrb[0].mxu0
        %1042 = vmatprep.mubr.f32.mxu0 0.0
        %1043 = vmatmul.mubr.f32.gmra.mrb[0].mxu0 %v578
        %v1044 = vpop.f32.mrb[0].mxu0
        %v1045 = vadd.f32 %v467, %v1044
        %v1046 = vpop.f32.mrb[0].mxu0
        %1047 = vmatprep.mubr.f32.mxu0 0.0
        %1048 = vmatmul.mubr.f32.gmra.mrb[0].mxu0 %v581
        %v1049 = vpop.f32.mrb[0].mxu0
        %v1050 = vadd.f32 %v472, %v1049
        %v1051 = vpop.f32.mrb[0].mxu0
        %1052 = vmatprep.mubr.f32.mxu0 0.0
        %1053 = vmatmul.mubr.f32.gmra.mrb[0].mxu0 %v584
        %v1054 = vpop.f32.mrb[0].mxu0
        %v1055 = vadd.f32 %v477, %v1054
        %v1056 = vpop.f32.mrb[0].mxu0
        %1057 = vmatprep.mubr.f32.mxu0 0.0
        %1058 = vmatmul.mubr.f32.gmra.mrb[0].mxu0 %v587
        %v1059 = vpop.f32.mrb[0].mxu0
        %v1060 = vadd.f32 %v482, %v1059
        %v1061 = vpop.f32.mrb[0].mxu0
        %1062 = vmatprep.mubr.f32.mxu0 0.0
        %1063 = vmatmul.mubr.f32.gmra.mrb[0].mxu0 %v590
        %v1064 = vpop.f32.mrb[0].mxu0
        %v1065 = vadd.f32 %v487, %v1064
        %v1066 = vpop.f32.mrb[0].mxu0
        %1067 = vmatprep.mubr.f32.mxu0 0.0
        %1068 = vmatmul.mubr.f32.gmra.mrb[0].mxu0 %v593
        %v1069 = vpop.f32.mrb[0].mxu0
        %v1070 = vadd.f32 %v492, %v1069
        %v1071 = vpop.f32.mrb[0].mxu0
        %1072 = vmatprep.mubr.f32.mxu0 0.0
        %1073 = vmatmul.mubr.f32.gmra.mrb[0].mxu0 %v596
        %v1074 = vpop.f32.mrb[0].mxu0
        %v1075 = vadd.f32 %v497, %v1074
        %v1076 = vpop.f32.mrb[0].mxu0
        %1077 = vmatprep.mubr.f32.mxu0 0.0
        %1078 = vmatmul.mubr.f32.gmra.mrb[0].mxu0 %v599
        %v1079 = vpop.f32.mrb[0].mxu0
        %v1080 = vadd.f32 %v502, %v1079
        %v1081 = vpop.f32.mrb[0].mxu0
        %1082 = vdwg.mxu0
        %v1083 = vld [vmem:[%s273] sm:$0x7]
        %v1085 = vlaneseq
        %v1086 = vshrl.u32 %v1085, 7
        %v1087 = vsub.s32 0, %v1086
        %v1088 = vrot.slane %v1083, %v1087
        %v1089 = vlaneseq
        %v1090 = vshrl.u32 %v1089, 7
        %v1091 = vsub.s32 1, %v1090
        %v1092 = vrot.slane %v1083, %v1091
        %v1093 = vlaneseq
        %v1094 = vshrl.u32 %v1093, 7
        %v1095 = vsub.s32 2, %v1094
        %v1096 = vrot.slane %v1083, %v1095
        %v1100 = vadd.f32 %v668, %v1088
        %v1101 = vadd.f32 %v670, %v1092
        %v1102 = vadd.f32 %v925, %v1096
        %v1103 = vadd.f32 %v674, %v1088
        %v1104 = vadd.f32 %v676, %v1092
        %v1105 = vadd.f32 %v930, %v1096
        %v1106 = vadd.f32 %v680, %v1088
        %v1107 = vadd.f32 %v682, %v1092
        %v1108 = vadd.f32 %v935, %v1096
        %v1109 = vadd.f32 %v686, %v1088
        %v1110 = vadd.f32 %v688, %v1092
        %v1111 = vadd.f32 %v940, %v1096
        %v1112 = vadd.f32 %v692, %v1088
        %v1113 = vadd.f32 %v694, %v1092
        %v1114 = vadd.f32 %v945, %v1096
        %v1115 = vadd.f32 %v698, %v1088
        %v1116 = vadd.f32 %v700, %v1092
        %v1117 = vadd.f32 %v950, %v1096
        %v1118 = vadd.f32 %v704, %v1088
        %v1119 = vadd.f32 %v706, %v1092
        %v1120 = vadd.f32 %v955, %v1096
        %v1121 = vadd.f32 %v710, %v1088
        %v1122 = vadd.f32 %v712, %v1092
        %v1123 = vadd.f32 %v960, %v1096
        %v1124 = vadd.f32 %v716, %v1088
        %v1125 = vadd.f32 %v718, %v1092
        %v1126 = vadd.f32 %v965, %v1096
        %v1127 = vadd.f32 %v722, %v1088
        %v1128 = vadd.f32 %v724, %v1092
        %v1129 = vadd.f32 %v970, %v1096
        %v1130 = vadd.f32 %v728, %v1088
        %v1131 = vadd.f32 %v730, %v1092
        %v1132 = vadd.f32 %v975, %v1096
        %v1133 = vadd.f32 %v734, %v1088
        %v1134 = vadd.f32 %v736, %v1092
        %v1135 = vadd.f32 %v980, %v1096
        %v1136 = vadd.f32 %v740, %v1088
        %v1137 = vadd.f32 %v742, %v1092
        %v1138 = vadd.f32 %v985, %v1096
        %v1139 = vadd.f32 %v746, %v1088
        %v1140 = vadd.f32 %v748, %v1092
        %v1141 = vadd.f32 %v990, %v1096
        %v1142 = vadd.f32 %v752, %v1088
        %v1143 = vadd.f32 %v754, %v1092
        %v1144 = vadd.f32 %v995, %v1096
        %v1145 = vadd.f32 %v758, %v1088
        %v1146 = vadd.f32 %v760, %v1092
        %v1147 = vadd.f32 %v1000, %v1096
        %v1148 = vadd.f32 %v764, %v1088
        %v1149 = vadd.f32 %v766, %v1092
        %v1150 = vadd.f32 %v1005, %v1096
        %v1151 = vadd.f32 %v770, %v1088
        %v1152 = vadd.f32 %v772, %v1092
        %v1153 = vadd.f32 %v1010, %v1096
        %v1154 = vadd.f32 %v776, %v1088
        %v1155 = vadd.f32 %v778, %v1092
        %v1156 = vadd.f32 %v1015, %v1096
        %v1157 = vadd.f32 %v782, %v1088
        %v1158 = vadd.f32 %v784, %v1092
        %v1159 = vadd.f32 %v1020, %v1096
        %v1160 = vadd.f32 %v788, %v1088
        %v1161 = vadd.f32 %v790, %v1092
        %v1162 = vadd.f32 %v1025, %v1096
        %v1163 = vadd.f32 %v794, %v1088
        %v1164 = vadd.f32 %v796, %v1092
        %v1165 = vadd.f32 %v1030, %v1096
        %v1166 = vadd.f32 %v800, %v1088
        %v1167 = vadd.f32 %v802, %v1092
        %v1168 = vadd.f32 %v1035, %v1096
        %v1169 = vadd.f32 %v806, %v1088
        %v1170 = vadd.f32 %v808, %v1092
        %v1171 = vadd.f32 %v1040, %v1096
        %v1172 = vadd.f32 %v812, %v1088
        %v1173 = vadd.f32 %v814, %v1092
        %v1174 = vadd.f32 %v1045, %v1096
        %v1175 = vadd.f32 %v818, %v1088
        %v1176 = vadd.f32 %v820, %v1092
        %v1177 = vadd.f32 %v1050, %v1096
        %v1178 = vadd.f32 %v824, %v1088
        %v1179 = vadd.f32 %v826, %v1092
        %v1180 = vadd.f32 %v1055, %v1096
        %v1181 = vadd.f32 %v830, %v1088
        %v1182 = vadd.f32 %v832, %v1092
        %v1183 = vadd.f32 %v1060, %v1096
        %v1184 = vadd.f32 %v836, %v1088
        %v1185 = vadd.f32 %v838, %v1092
        %v1186 = vadd.f32 %v1065, %v1096
        %v1187 = vadd.f32 %v842, %v1088
        %v1188 = vadd.f32 %v844, %v1092
        %v1189 = vadd.f32 %v1070, %v1096
        %v1190 = vadd.f32 %v848, %v1088
        %v1191 = vadd.f32 %v850, %v1092
        %v1192 = vadd.f32 %v1075, %v1096
        %v1193 = vadd.f32 %v854, %v1088
        %v1194 = vadd.f32 %v856, %v1092
        %v1195 = vadd.f32 %v1080, %v1096
        %v1196 = vmul.f32 %v1100, 1.442695
        %v1197 = vpow.pop %v1196
        %v1198 = vmul.f32 %v1101, 1.442695
        %v1199 = vpow.pop %v1198
        %v1200 = vmul.f32 %v1102, 1.442695
        %v1201 = vpow.pop %v1200
        %v1202 = vmul.f32 %v1103, 1.442695
        %v1203 = vpow.pop %v1202
        %v1204 = vmul.f32 %v1104, 1.442695
        %v1205 = vpow.pop %v1204
        %v1206 = vmul.f32 %v1105, 1.442695
        %v1207 = vpow.pop %v1206
        %v1208 = vmul.f32 %v1106, 1.442695
        %v1209 = vpow.pop %v1208
        %v1210 = vmul.f32 %v1107, 1.442695
        %v1211 = vpow.pop %v1210
        %v1212 = vmul.f32 %v1108, 1.442695
        %v1213 = vpow.pop %v1212
        %v1214 = vmul.f32 %v1109, 1.442695
        %v1215 = vpow.pop %v1214
        %v1216 = vmul.f32 %v1110, 1.442695
        %v1217 = vpow.pop %v1216
        %v1218 = vmul.f32 %v1111, 1.442695
        %v1219 = vpow.pop %v1218
        %v1220 = vmul.f32 %v1112, 1.442695
        %v1221 = vpow.pop %v1220
        %v1222 = vmul.f32 %v1113, 1.442695
        %v1223 = vpow.pop %v1222
        %v1224 = vmul.f32 %v1114, 1.442695
        %v1225 = vpow.pop %v1224
        %v1226 = vmul.f32 %v1115, 1.442695
        %v1227 = vpow.pop %v1226
        %v1228 = vmul.f32 %v1116, 1.442695
        %v1229 = vpow.pop %v1228
        %v1230 = vmul.f32 %v1117, 1.442695
        %v1231 = vpow.pop %v1230
        %v1232 = vmul.f32 %v1118, 1.442695
        %v1233 = vpow.pop %v1232
        %v1234 = vmul.f32 %v1119, 1.442695
        %v1235 = vpow.pop %v1234
        %v1236 = vmul.f32 %v1120, 1.442695
        %v1237 = vpow.pop %v1236
        %v1238 = vmul.f32 %v1121, 1.442695
        %v1239 = vpow.pop %v1238
        %v1240 = vmul.f32 %v1122, 1.442695
        %v1241 = vpow.pop %v1240
        %v1242 = vmul.f32 %v1123, 1.442695
        %v1243 = vpow.pop %v1242
        %v1244 = vmul.f32 %v1124, 1.442695
        %v1245 = vpow.pop %v1244
        %v1246 = vmul.f32 %v1125, 1.442695
        %v1247 = vpow.pop %v1246
        %v1248 = vmul.f32 %v1126, 1.442695
        %v1249 = vpow.pop %v1248
        %v1250 = vmul.f32 %v1127, 1.442695
        %v1251 = vpow.pop %v1250
        %v1252 = vmul.f32 %v1128, 1.442695
        %v1253 = vpow.pop %v1252
        %v1254 = vmul.f32 %v1129, 1.442695
        %v1255 = vpow.pop %v1254
        %v1256 = vmul.f32 %v1130, 1.442695
        %v1257 = vpow.pop %v1256
        %v1258 = vmul.f32 %v1131, 1.442695
        %v1259 = vpow.pop %v1258
        %v1260 = vmul.f32 %v1132, 1.442695
        %v1261 = vpow.pop %v1260
        %v1262 = vmul.f32 %v1133, 1.442695
        %v1263 = vpow.pop %v1262
        %v1264 = vmul.f32 %v1134, 1.442695
        %v1265 = vpow.pop %v1264
        %v1266 = vmul.f32 %v1135, 1.442695
        %v1267 = vpow.pop %v1266
        %v1268 = vmul.f32 %v1136, 1.442695
        %v1269 = vpow.pop %v1268
        %v1270 = vmul.f32 %v1137, 1.442695
        %v1271 = vpow.pop %v1270
        %v1272 = vmul.f32 %v1138, 1.442695
        %v1273 = vpow.pop %v1272
        %v1274 = vmul.f32 %v1139, 1.442695
        %v1275 = vpow.pop %v1274
        %v1276 = vmul.f32 %v1140, 1.442695
        %v1277 = vpow.pop %v1276
        %v1278 = vmul.f32 %v1141, 1.442695
        %v1279 = vpow.pop %v1278
        %v1280 = vmul.f32 %v1142, 1.442695
        %v1281 = vpow.pop %v1280
        %v1282 = vmul.f32 %v1143, 1.442695
        %v1283 = vpow.pop %v1282
        %v1284 = vmul.f32 %v1144, 1.442695
        %v1285 = vpow.pop %v1284
        %v1286 = vmul.f32 %v1145, 1.442695
        %v1287 = vpow.pop %v1286
        %v1288 = vmul.f32 %v1146, 1.442695
        %v1289 = vpow.pop %v1288
        %v1290 = vmul.f32 %v1147, 1.442695
        %v1291 = vpow.pop %v1290
        %v1292 = vmul.f32 %v1148, 1.442695
        %v1293 = vpow.pop %v1292
        %v1294 = vmul.f32 %v1149, 1.442695
        %v1295 = vpow.pop %v1294
        %v1296 = vmul.f32 %v1150, 1.442695
        %v1297 = vpow.pop %v1296
        %v1298 = vmul.f32 %v1151, 1.442695
        %v1299 = vpow.pop %v1298
        %v1300 = vmul.f32 %v1152, 1.442695
        %v1301 = vpow.pop %v1300
        %v1302 = vmul.f32 %v1153, 1.442695
        %v1303 = vpow.pop %v1302
        %v1304 = vmul.f32 %v1154, 1.442695
        %v1305 = vpow.pop %v1304
        %v1306 = vmul.f32 %v1155, 1.442695
        %v1307 = vpow.pop %v1306
        %v1308 = vmul.f32 %v1156, 1.442695
        %v1309 = vpow.pop %v1308
        %v1310 = vmul.f32 %v1157, 1.442695
        %v1311 = vpow.pop %v1310
        %v1312 = vmul.f32 %v1158, 1.442695
        %v1313 = vpow.pop %v1312
        %v1314 = vmul.f32 %v1159, 1.442695
        %v1315 = vpow.pop %v1314
        %v1316 = vmul.f32 %v1160, 1.442695
        %v1317 = vpow.pop %v1316
        %v1318 = vmul.f32 %v1161, 1.442695
        %v1319 = vpow.pop %v1318
        %v1320 = vmul.f32 %v1162, 1.442695
        %v1321 = vpow.pop %v1320
        %v1322 = vmul.f32 %v1163, 1.442695
        %v1323 = vpow.pop %v1322
        %v1324 = vmul.f32 %v1164, 1.442695
        %v1325 = vpow.pop %v1324
        %v1326 = vmul.f32 %v1165, 1.442695
        %v1327 = vpow.pop %v1326
        %v1328 = vmul.f32 %v1166, 1.442695
        %v1329 = vpow.pop %v1328
        %v1330 = vmul.f32 %v1167, 1.442695
        %v1331 = vpow.pop %v1330
        %v1332 = vmul.f32 %v1168, 1.442695
        %v1333 = vpow.pop %v1332
        %v1334 = vmul.f32 %v1169, 1.442695
        %v1335 = vpow.pop %v1334
        %v1336 = vmul.f32 %v1170, 1.442695
        %v1337 = vpow.pop %v1336
        %v1338 = vmul.f32 %v1171, 1.442695
        %v1339 = vpow.pop %v1338
        %v1340 = vmul.f32 %v1172, 1.442695
        %v1341 = vpow.pop %v1340
        %v1342 = vmul.f32 %v1173, 1.442695
        %v1343 = vpow.pop %v1342
        %v1344 = vmul.f32 %v1174, 1.442695
        %v1345 = vpow.pop %v1344
        %v1346 = vmul.f32 %v1175, 1.442695
        %v1347 = vpow.pop %v1346
        %v1348 = vmul.f32 %v1176, 1.442695
        %v1349 = vpow.pop %v1348
        %v1350 = vmul.f32 %v1177, 1.442695
        %v1351 = vpow.pop %v1350
        %v1352 = vmul.f32 %v1178, 1.442695
        %v1353 = vpow.pop %v1352
        %v1354 = vmul.f32 %v1179, 1.442695
        %v1355 = vpow.pop %v1354
        %v1356 = vmul.f32 %v1180, 1.442695
        %v1357 = vpow.pop %v1356
        %v1358 = vmul.f32 %v1181, 1.442695
        %v1359 = vpow.pop %v1358
        %v1360 = vmul.f32 %v1182, 1.442695
        %v1361 = vpow.pop %v1360
        %v1362 = vmul.f32 %v1183, 1.442695
        %v1363 = vpow.pop %v1362
        %v1364 = vmul.f32 %v1184, 1.442695
        %v1365 = vpow.pop %v1364
        %v1366 = vmul.f32 %v1185, 1.442695
        %v1367 = vpow.pop %v1366
        %v1368 = vmul.f32 %v1186, 1.442695
        %v1369 = vpow.pop %v1368
        %v1370 = vmul.f32 %v1187, 1.442695
        %v1371 = vpow.pop %v1370
        %v1372 = vmul.f32 %v1188, 1.442695
        %v1373 = vpow.pop %v1372
        %v1374 = vmul.f32 %v1189, 1.442695
        %v1375 = vpow.pop %v1374
        %v1376 = vmul.f32 %v1190, 1.442695
        %v1377 = vpow.pop %v1376
        %v1378 = vmul.f32 %v1191, 1.442695
        %v1379 = vpow.pop %v1378
        %v1380 = vmul.f32 %v1192, 1.442695
        %v1381 = vpow.pop %v1380
        %v1382 = vmul.f32 %v1193, 1.442695
        %v1383 = vpow.pop %v1382
        %v1384 = vmul.f32 %v1194, 1.442695
        %v1385 = vpow.pop %v1384
        %v1386 = vmul.f32 %v1195, 1.442695
        %v1387 = vpow.pop %v1386
        %1388 = vst [vmem:[%s251] sm:$0xff] %v1197
        %1389 = vst [vmem:[%s251 + $0x8] sm:$0xff] %v1199
        %1390 = vst [vmem:[%s251 + $0x10] sm:$0xff] %v1201
        %1391 = vst [vmem:[%s251 + $0x18] sm:$0xff] %v1203
        %1392 = vst [vmem:[%s251 + $0x20] sm:$0xff] %v1205
        %1393 = vst [vmem:[%s251 + $0x28] sm:$0xff] %v1207
        %1394 = vst [vmem:[%s251 + $0x30] sm:$0xff] %v1209
        %1395 = vst [vmem:[%s251 + $0x38] sm:$0xff] %v1211
        %1396 = vst [vmem:[%s251 + $0x40] sm:$0xff] %v1213
        %1397 = vst [vmem:[%s251 + $0x48] sm:$0xff] %v1215
        %1398 = vst [vmem:[%s251 + $0x50] sm:$0xff] %v1217
        %1399 = vst [vmem:[%s251 + $0x58] sm:$0xff] %v1219
        %1400 = vst [vmem:[%s251 + $0x60] sm:$0xff] %v1221
        %1401 = vst [vmem:[%s251 + $0x68] sm:$0xff] %v1223
        %1402 = vst [vmem:[%s251 + $0x70] sm:$0xff] %v1225
        %1403 = vst [vmem:[%s251 + $0x78] sm:$0xff] %v1227
        %1404 = vst [vmem:[%s251 + $0x80] sm:$0xff] %v1229
        %1405 = vst [vmem:[%s251 + $0x88] sm:$0xff] %v1231
        %1406 = vst [vmem:[%s251 + $0x90] sm:$0xff] %v1233
        %1407 = vst [vmem:[%s251 + $0x98] sm:$0xff] %v1235
        %1408 = vst [vmem:[%s251 + $0xa0] sm:$0xff] %v1237
        %1409 = vst [vmem:[%s251 + $0xa8] sm:$0xff] %v1239
        %1410 = vst [vmem:[%s251 + $0xb0] sm:$0xff] %v1241
        %1411 = vst [vmem:[%s251 + $0xb8] sm:$0xff] %v1243
        %1412 = vst [vmem:[%s251 + $0xc0] sm:$0xff] %v1245
        %1413 = vst [vmem:[%s251 + $0xc8] sm:$0xff] %v1247
        %1414 = vst [vmem:[%s251 + $0xd0] sm:$0xff] %v1249
        %1415 = vst [vmem:[%s251 + $0xd8] sm:$0xff] %v1251
        %1416 = vst [vmem:[%s251 + $0xe0] sm:$0xff] %v1253
        %1417 = vst [vmem:[%s251 + $0xe8] sm:$0xff] %v1255
        %1418 = vst [vmem:[%s251 + $0xf0] sm:$0xff] %v1257
        %1419 = vst [vmem:[%s251 + $0xf8] sm:$0xff] %v1259
        %1420 = vst [vmem:[%s251 + $0x100] sm:$0xff] %v1261
        %1421 = vst [vmem:[%s251 + $0x108] sm:$0xff] %v1263
        %1422 = vst [vmem:[%s251 + $0x110] sm:$0xff] %v1265
        %1423 = vst [vmem:[%s251 + $0x118] sm:$0xff] %v1267
        %1424 = vst [vmem:[%s251 + $0x120] sm:$0xff] %v1269
        %1425 = vst [vmem:[%s251 + $0x128] sm:$0xff] %v1271
        %1426 = vst [vmem:[%s251 + $0x130] sm:$0xff] %v1273
        %1427 = vst [vmem:[%s251 + $0x138] sm:$0xff] %v1275
        %1428 = vst [vmem:[%s251 + $0x140] sm:$0xff] %v1277
        %1429 = vst [vmem:[%s251 + $0x148] sm:$0xff] %v1279
        %1430 = vst [vmem:[%s251 + $0x150] sm:$0xff] %v1281
        %1431 = vst [vmem:[%s251 + $0x158] sm:$0xff] %v1283
        %1432 = vst [vmem:[%s251 + $0x160] sm:$0xff] %v1285
        %1433 = vst [vmem:[%s251 + $0x168] sm:$0xff] %v1287
        %1434 = vst [vmem:[%s251 + $0x170] sm:$0xff] %v1289
        %1435 = vst [vmem:[%s251 + $0x178] sm:$0xff] %v1291
        %1436 = vst [vmem:[%s251 + $0x180] sm:$0xff] %v1293
        %1437 = vst [vmem:[%s251 + $0x188] sm:$0xff] %v1295
        %1438 = vst [vmem:[%s251 + $0x190] sm:$0xff] %v1297
        %1439 = vst [vmem:[%s251 + $0x198] sm:$0xff] %v1299
        %1440 = vst [vmem:[%s251 + $0x1a0] sm:$0xff] %v1301
        %1441 = vst [vmem:[%s251 + $0x1a8] sm:$0xff] %v1303
        %1442 = vst [vmem:[%s251 + $0x1b0] sm:$0xff] %v1305
        %1443 = vst [vmem:[%s251 + $0x1b8] sm:$0xff] %v1307
        %1444 = vst [vmem:[%s251 + $0x1c0] sm:$0xff] %v1309
        %1445 = vst [vmem:[%s251 + $0x1c8] sm:$0xff] %v1311
        %1446 = vst [vmem:[%s251 + $0x1d0] sm:$0xff] %v1313
        %1447 = vst [vmem:[%s251 + $0x1d8] sm:$0xff] %v1315
        %1448 = vst [vmem:[%s251 + $0x1e0] sm:$0xff] %v1317
        %1449 = vst [vmem:[%s251 + $0x1e8] sm:$0xff] %v1319
        %1450 = vst [vmem:[%s251 + $0x1f0] sm:$0xff] %v1321
        %1451 = vst [vmem:[%s251 + $0x1f8] sm:$0xff] %v1323
        %1452 = vst [vmem:[%s251 + $0x200] sm:$0xff] %v1325
        %1453 = vst [vmem:[%s251 + $0x208] sm:$0xff] %v1327
        %1454 = vst [vmem:[%s251 + $0x210] sm:$0xff] %v1329
        %1455 = vst [vmem:[%s251 + $0x218] sm:$0xff] %v1331
        %1456 = vst [vmem:[%s251 + $0x220] sm:$0xff] %v1333
        %1457 = vst [vmem:[%s251 + $0x228] sm:$0xff] %v1335
        %1458 = vst [vmem:[%s251 + $0x230] sm:$0xff] %v1337
        %1459 = vst [vmem:[%s251 + $0x238] sm:$0xff] %v1339
        %1460 = vst [vmem:[%s251 + $0x240] sm:$0xff] %v1341
        %1461 = vst [vmem:[%s251 + $0x248] sm:$0xff] %v1343
        %1462 = vst [vmem:[%s251 + $0x250] sm:$0xff] %v1345
        %1463 = vst [vmem:[%s251 + $0x258] sm:$0xff] %v1347
        %1464 = vst [vmem:[%s251 + $0x260] sm:$0xff] %v1349
        %1465 = vst [vmem:[%s251 + $0x268] sm:$0xff] %v1351
        %1466 = vst [vmem:[%s251 + $0x270] sm:$0xff] %v1353
        %1467 = vst [vmem:[%s251 + $0x278] sm:$0xff] %v1355
        %1468 = vst [vmem:[%s251 + $0x280] sm:$0xff] %v1357
        %1469 = vst [vmem:[%s251 + $0x288] sm:$0xff] %v1359
        %1470 = vst [vmem:[%s251 + $0x290] sm:$0xff] %v1361
        %1471 = vst [vmem:[%s251 + $0x298] sm:$0xff] %v1363
        %1472 = vst [vmem:[%s251 + $0x2a0] sm:$0xff] %v1365
        %1473 = vst [vmem:[%s251 + $0x2a8] sm:$0xff] %v1367
        %1474 = vst [vmem:[%s251 + $0x2b0] sm:$0xff] %v1369
        %1475 = vst [vmem:[%s251 + $0x2b8] sm:$0xff] %v1371
        %1476 = vst [vmem:[%s251 + $0x2c0] sm:$0xff] %v1373
        %1477 = vst [vmem:[%s251 + $0x2c8] sm:$0xff] %v1375
        %1478 = vst [vmem:[%s251 + $0x2d0] sm:$0xff] %v1377
        %1479 = vst [vmem:[%s251 + $0x2d8] sm:$0xff] %v1379
        %1480 = vst [vmem:[%s251 + $0x2e0] sm:$0xff] %v1381
        %1481 = vst [vmem:[%s251 + $0x2e8] sm:$0xff] %v1383
        %1482 = vst [vmem:[%s251 + $0x2f0] sm:$0xff] %v1385
        %1483 = vst [vmem:[%s251 + $0x2f8] sm:$0xff] %v1387
        %s1484 = sand.u32 %s144, 1
        %s1485 = scalar_lea.sflag [#allocation3], %s1484
        %s1486 = sand.u32 %s144, 1
        %s1487 = smul.addr %s1486, 768
        %s1488 = scalar_lea.vmem [#allocation2], %s1487
        // Predicated region
        $region37: #{tpu_custom_call.1} parent=35 // pred_check
          %p1489 = pneg %p154
        $region38: #{tpu_custom_call.1} parent=35 // pred_check_branch
          %1491 = sbr.rel (%p1489) target = $region40
        $region39: #{tpu_custom_call.1} parent=35 // pred_region
          %s1492 = smul.u32 32, %s22
          %s1493 = smul.u32 3, %s23
          %s1495 = ssub.s32 12288, 12288
          %1496 = vsyncadd %s1485, %s1495
          %s1497 = smul.addr %s1492, 3
          %s1498 = sadd.s32 %s1493, %s1497
          %s1499 = smul.addr %s1498, 128
          %s1500 = scalar_lea.hbm %s4, %s1499
          %s1501 = sshll.u32 %s1488, 4
          %s1502 = int_to_ptr.vmem [resolvable:$true] %s1501
          %1507 = dma.vmem_to_hbm [thread:$0]  %s1502, 12288, %s1500, %s1485, 384, 384, 24
        $region40: #{tpu_custom_call.1} parent=35 // pred_fallthru
          _
      $region36: #{tpu_custom_call.1} parent=5 // pred_fallthru
        _
      %p1508 = scmp.le.s32.totalorder 2, %s13
      // Predicated region
      $region41: #{tpu_custom_call.1} parent=5 // pred_check
        %p1509 = pneg %p1508
      $region42: #{tpu_custom_call.1} parent=5 // pred_check_branch
        %1511 = sbr.rel (%p1509) target = $region44
      $region43: #{tpu_custom_call.1} parent=5 // pred_region
        %s1512 = ssub.s32 %s13, 2
        // Predicated region
        $region45: #{tpu_custom_call.1} parent=43 // pred_check
          %p1513 = pneg %p160
        $region46: #{tpu_custom_call.1} parent=43 // pred_check_branch
          %1515 = sbr.rel (%p1513) target = $region48
        $region47: #{tpu_custom_call.1} parent=43 // pred_region
          %s1516 = sand.u32 %s145, 1
          %s1517 = scalar_lea.sflag [#allocation3], %s1516
          %s1518 = sand.u32 %s145, 1
          %s1519 = smul.addr %s1518, 768
          %s1520 = scalar_lea.vmem [#allocation2], %s1519
          %1521 = dma.done %s1517, 12288
        $region48: #{tpu_custom_call.1} parent=43 // pred_fallthru
          _
      $region44: #{tpu_custom_call.1} parent=5 // pred_fallthru
        _
    $region6: #{tpu_custom_call.1} parent=1 // loop_footer
      %s17 = sadd.s32 1, %s13
    $region7: #{tpu_custom_call.1} parent=1 // loop_footer_branch
      %12 = sbr.rel target = $region3
    $region8: #{tpu_custom_call.1} parent=1 // loop_exit
      _
    %1522 = vsyncpa [#allocation3], 1
    %s1523 = scalar_lea.sflag [#allocation3], 1
    %1524 = vsyncpa %s1523, 1

</llo_original>
